<compile_context>
chip_gen: v5e
topology: v5e:2x2
jax: 0.10.0
libtpu: 0.0.40
codegen_flags: <defaults>
</compile_context>

<pallas_src>
import jax
import jax.numpy as jnp
from jax.experimental import pallas as pl
from jax.experimental.pallas import tpu as pltpu

_SLAB_C = 512                  # lane width of the dense slab (multiple of 128)
_MAX_TILE_R = 1024             # (1024, 512) f32 = 2 MiB block, 8 MiB double-buffered
_PALLAS_MIN_ELEMS = 1 << 15    # below this, launch overhead dwarfs the work


def _affine_kernel(w_ref, b_ref, x_ref, o_ref):
    # w_ref / b_ref: (1,) f32 scalars in SMEM (scalar prefetch).
    # x_ref / o_ref: (tile_r, 512) f32 VMEM tiles.
    o_ref[...] = x_ref[...] * w_ref[0] + b_ref[0]   # single fused VPU mul-add


def _choose_tile_r(rows: int) -> int:
    # Keep >=4 grid steps when there are enough rows (v7x megacore sharding),
    # cap the block at 2 MiB, and never let the block exceed the array extent.
    quarter = (rows // 4) // 8 * 8
    tile = min(_MAX_TILE_R, max(256, quarter))
    tile = min(tile, max(8, (rows // 8) * 8))
    return tile


def _linear_pallas(x, weight, bias):
    # Preconditions (checked by the dispatcher): x is (N, 1) f32 and
    # N % _SLAB_C == 0 with N >= 8 * _SLAB_C, so both reshapes below are free.
    n = x.shape[0]
    dtype = x.dtype
    total = x.size
    rows = total // _SLAB_C
    tile_r = _choose_tile_r(rows)

    slab = x.reshape(rows, _SLAB_C)                 # free metadata reshape
    w1 = weight.reshape(1).astype(dtype)
    b1 = bias.reshape(1).astype(dtype)

    out = pl.pallas_call(
        _affine_kernel,
        out_shape=jax.ShapeDtypeStruct((rows, _SLAB_C), dtype),
        grid_spec=pltpu.PrefetchScalarGridSpec(
            num_scalar_prefetch=2,                  # weight, bias -> SMEM once
            grid=(pl.cdiv(rows, tile_r),),          # partial last block is masked
            in_specs=[
                pl.BlockSpec((tile_r, _SLAB_C), lambda i, w, b: (i, 0)),
            ],
            out_specs=pl.BlockSpec((tile_r, _SLAB_C), lambda i, w, b: (i, 0)),
        ),
        compiler_params=pltpu.CompilerParams(
            # Independent tiles (no accumulator): shard across v7x's 2 TCs.
            dimension_semantics=("parallel",),
        ),
    )(w1, b1, slab)

    return out.reshape(n, 1)                        # free metadata reshape


def linear_regression_forward(x, weight, bias, *, force_pallas=False):
    """x: (N, 1) f32, weight: (1, 1) f32, bias: (1,) f32 -> (N, 1) f32."""
    assert x.ndim == 2 and x.shape[1] == 1, "kernel specialized for in_features == 1"
    total = x.size
    aligned = (total % _SLAB_C == 0) and (total >= 8 * _SLAB_C)
    use_pallas = aligned and (force_pallas or total >= _PALLAS_MIN_ELEMS)
    if not use_pallas:
        # Misaligned or tiny batch: XLA's fused x*w+b reads/writes N exactly
        # once — optimal for this memory-bound op and avoids any pad/slice
        # copies the padded Pallas path would need.
        return x * weight.reshape(()) + bias.reshape(())
    return _linear_pallas(x, weight, bias)


if __name__ == "__main__":
    key = jax.random.PRNGKey(0)
    kx0, kx1, kx2, kx3, kw, kb = jax.random.split(key, 6)

    # nn.Linear(1, 1) init: uniform(-1, 1) since bound = 1/sqrt(in_features) = 1
    weight = jax.random.uniform(kw, (1, 1), jnp.float32, -1.0, 1.0)
    bias = jax.random.uniform(kb, (1,), jnp.float32, -1.0, 1.0)

    def ref(x):
        return x @ weight.T + bias

    # 1) Tiny batch -> XLA fallback path (dispatch check).
    x_tiny = jax.random.normal(kx0, (8, 1), jnp.float32)
    y_tiny = jax.block_until_ready(linear_regression_forward(x_tiny, weight, bias))
    assert y_tiny.shape == (8, 1)
    assert jnp.allclose(y_tiny, ref(x_tiny), atol=1e-6), "tiny-batch mismatch"

    # 2) Misaligned batch -> XLA fallback (single fused read/write, no copies).
    x_odd = jax.random.normal(kx1, (1037, 1), jnp.float32)
    y_odd = jax.block_until_ready(linear_regression_forward(x_odd, weight, bias))
    assert y_odd.shape == (1037, 1)
    assert jnp.allclose(y_odd, ref(x_odd), atol=1e-6), "misaligned-batch mismatch"

    # 3) Small aligned batch forced through Pallas (single block, zero-copy
    #    reshape in/out, scalar-prefetched weight/bias).
    x_small = jax.random.normal(kx2, (4096, 1), jnp.float32)
    y_small = jax.block_until_ready(
        linear_regression_forward(x_small, weight, bias, force_pallas=True))
    assert y_small.shape == (4096, 1)
    assert jnp.allclose(y_small, ref(x_small), atol=1e-6), "small-batch mismatch"

    # 4) Larger aligned batch: multi-step pipelined grid (>=4 steps) with a
    #    masked partial final row-block (rows = 1003, tile_r = 256).
    x_big = jax.random.normal(kx3, (512 * 1003, 1), jnp.float32)
    y_big = jax.block_until_ready(linear_regression_forward(x_big, weight, bias))
    assert y_big.shape == (512 * 1003, 1)
    assert jnp.allclose(y_big, ref(x_big), atol=1e-6), "big-batch mismatch"

    print("KERNEL_OK")
</pallas_src>

<mosaic_0001>
module attributes {stable_mosaic.version = 11 : i64} {
  func.func @_affine_kernel(%arg0: i32, %arg1: memref<1xf32, #tpu.memory_space<smem>>, %arg2: memref<1xf32, #tpu.memory_space<smem>>, %arg3: memref<8x512xf32, #tpu.memory_space<vmem>>, %arg4: memref<8x512xf32, #tpu.memory_space<vmem>>) attributes {dimension_semantics = [#tpu.dimension_semantics<parallel>], iteration_bounds = array<i64: 1>, scalar_prefetch = 2 : i64, scratch_operands = 0 : i64, tpu.core_type = #tpu.core_type<tc>, window_params = [{transform_indices = @transform_0, window_bounds = array<i64: 8, 512>}, {transform_indices = @transform_1, window_bounds = array<i64: 8, 512>}]} {
    %c0 = arith.constant 0 : index
    %c0_0 = arith.constant 0 : index
    %0 = vector.load %arg3[%c0, %c0_0] : memref<8x512xf32, #tpu.memory_space<vmem>>, vector<8x512xf32>
    %c0_1 = arith.constant 0 : index
    %1 = memref.load %arg1[%c0_1] : memref<1xf32, #tpu.memory_space<smem>>
    %2 = vector.broadcast %1 : f32 to vector<8x512xf32>
    %3 = arith.mulf %0, %2 : vector<8x512xf32>
    %c0_2 = arith.constant 0 : index
    %4 = memref.load %arg2[%c0_2] : memref<1xf32, #tpu.memory_space<smem>>
    %5 = vector.broadcast %4 : f32 to vector<8x512xf32>
    %6 = arith.addf %3, %5 : vector<8x512xf32>
    %c0_3 = arith.constant 0 : index
    %c0_4 = arith.constant 0 : index
    %7 = vector.load %arg4[%c0_3, %c0_4] : memref<8x512xf32, #tpu.memory_space<vmem>>, vector<8x512xf32>
    tpu.vector_store %arg4[%c0_3, %c0_4], %6 {strides = array<i32>} : memref<8x512xf32, #tpu.memory_space<vmem>>, vector<8x512xf32>,
    return
  }
  func.func @transform_0(%arg0: i32, %arg1: memref<1xf32, #tpu.memory_space<smem>>, %arg2: memref<1xf32, #tpu.memory_space<smem>>) -> (i32, i32) {
    %c0_i32 = arith.constant 0 : i32
    %c0_i32_0 = arith.constant 0 : i32
    return %arg0, %c0_i32 : i32, i32
  }
  func.func @transform_1(%arg0: i32, %arg1: memref<1xf32, #tpu.memory_space<smem>>, %arg2: memref<1xf32, #tpu.memory_space<smem>>) -> (i32, i32) {
    %c0_i32 = arith.constant 0 : i32
    %c0_i32_0 = arith.constant 0 : i32
    return %arg0, %c0_i32 : i32, i32
  }
}

</mosaic_0001>

<llo_original>
// kernel: tpu_custom_call.1
$region0: #{tpu_custom_call.1}
  #allocation0 [shape = 'u32[]', space=smem, size = 0x4, offset = 0x4, fixed_abs, tag = 'smem constant byte address 0x4 - core index']
  #allocation1 [shape = 'u32[72,128]{1,0:T(1,128)}', space=vmem, size = 0x9000, scoped, tag = 'internal scratch']
  #allocation2 [shape = 's32[1]{0}', space=sflag, size = 0x4, scoped, tag = 'scoped memory for tpu_custom_call.1']
  #allocation3 [shape = 'f32[1]{0:T(128)S(6)}', space=smem, size = 0x200, scoped, tag = 'prefetched SMEM operand 0']
  #allocation4 [shape = 'f32[1]{0:T(128)S(6)}', space=smem, size = 0x200, scoped, tag = 'prefetched SMEM operand 1']
  %s0 = inlined_call_operand.<no memory space> [shape: f32[1], index: 0, kind: input, shape index: {}]
  %s1 = inlined_call_operand.<no memory space> [shape: f32[1], index: 1, kind: input, shape index: {}]
  %s2 = inlined_call_operand.hbm [shape: f32[8,512], index: 2, kind: input, shape index: {}]
  %s3 = inlined_call_operand.hbm [shape: f32[8,512], index: 3, kind: output, shape index: {}]
  %s4 = sld [smem:[#allocation0]]
  $region18: #{tpu_custom_call.1} parent=0
    _
  %s6 = ssub.s32 1, %s4
  %s7 = scalar_select 0, %s6, %s4
  %8 = sst [smem:[#allocation3]] %s0
  %9 = sst [smem:[#allocation4]] %s1
  $region1: #{tpu_custom_call.1} parent=0
    #allocation5 [shape = 'u8[16384]{0}', space=vmem, size = 0x4000, scoped, tag = 'input window, operand 2, single buffered']
    #allocation6 [shape = 's32[1]{0}', space=sflag, size = 0x4, scoped, tag = 'scoped memory for tpu_custom_call.1']
    #allocation7 [shape = 's32[1]{0}', space=sflag, size = 0x4, scoped, tag = 'scoped memory for tpu_custom_call.1']
    #allocation8 [shape = 'u8[16384]{0}', space=vmem, size = 0x4000, scoped, tag = 'output window, operand 0, single buffered']
    %10 = vsyncpa [#allocation6], 0
    %11 = vsyncpa [#allocation7], 0
    // Predicated region
    $region2: #{tpu_custom_call.1} parent=1 // pred_check
      _
    $region3: #{tpu_custom_call.1} parent=1 // pred_check_branch
      %13 = sbr.rel (0) target = $region5
    $region4: #{tpu_custom_call.1} parent=1 // pred_region
      %15 = vsyncadd [#allocation6], 0
      %s17 = sshll.u32 %s2, 4
      %s18 = int_to_ptr.hbm [resolvable:$true] %s17
      %s19 = sshll.u32 [#allocation5], 4
      %s20 = int_to_ptr.vmem [resolvable:$true] %s19
      %22 = dma.hbm_to_vmem [thread:$0]  %s18, 512, %s20, [#allocation6]
    $region5: #{tpu_custom_call.1} parent=1 // pred_fallthru
      _
    // Predicated region
    $region6: #{tpu_custom_call.1} parent=1 // pred_check
      _
    $region7: #{tpu_custom_call.1} parent=1 // pred_check_branch
      %24 = sbr.rel (0) target = $region9
    $region8: #{tpu_custom_call.1} parent=1 // pred_region
      %26 = dma.done [#allocation6], 512
    $region9: #{tpu_custom_call.1} parent=1 // pred_fallthru
      _
    %v27 = vld [vmem:[#allocation5] sm:$0xff]
    %v28 = vld [vmem:[#allocation5 + $0x8] sm:$0xff]
    %v29 = vld [vmem:[#allocation5 + $0x10] sm:$0xff]
    %v30 = vld [vmem:[#allocation5 + $0x18] sm:$0xff]
    %s31 = sld [smem:[#allocation3]]
    %v32 = vstv %s31
    %v33 = vmul.f32 %v27, %v32
    %v34 = vmul.f32 %v28, %v32
    %v35 = vmul.f32 %v29, %v32
    %v36 = vmul.f32 %v30, %v32
    %s37 = sld [smem:[#allocation4]]
    %v38 = vstv %s37
    %v39 = vadd.f32 %v33, %v38
    %v40 = vadd.f32 %v34, %v38
    %v41 = vadd.f32 %v35, %v38
    %v42 = vadd.f32 %v36, %v38
    %43 = vst [vmem:[#allocation8] sm:$0xff] %v39
    %44 = vst [vmem:[#allocation8 + $0x8] sm:$0xff] %v40
    %45 = vst [vmem:[#allocation8 + $0x10] sm:$0xff] %v41
    %46 = vst [vmem:[#allocation8 + $0x18] sm:$0xff] %v42
    // Predicated region
    $region10: #{tpu_custom_call.1} parent=1 // pred_check
      _
    $region11: #{tpu_custom_call.1} parent=1 // pred_check_branch
      %48 = sbr.rel (0) target = $region13
    $region12: #{tpu_custom_call.1} parent=1 // pred_region
      %50 = vsyncadd [#allocation7], 0
      %s52 = sshll.u32 [#allocation8], 4
      %s53 = int_to_ptr.vmem [resolvable:$true] %s52
      %s54 = sshll.u32 %s3, 4
      %s55 = int_to_ptr.hbm [resolvable:$true] %s54
      %57 = dma.vmem_to_hbm [thread:$0]  %s53, 512, %s55, [#allocation7]
    $region13: #{tpu_custom_call.1} parent=1 // pred_fallthru
      _
    // Predicated region
    $region14: #{tpu_custom_call.1} parent=1 // pred_check
      _
    $region15: #{tpu_custom_call.1} parent=1 // pred_check_branch
      %59 = sbr.rel (0) target = $region17
    $region16: #{tpu_custom_call.1} parent=1 // pred_region
      %61 = dma.done [#allocation7], 512
    $region17: #{tpu_custom_call.1} parent=1 // pred_fallthru
      _
    %62 = vsyncpa [#allocation6], 1
    %63 = vsyncpa [#allocation7], 1

</llo_original>
